<compile_context>
chip_gen: v5e
topology: v5e:2x2
jax: 0.10.0
libtpu: 0.0.40
codegen_flags: <defaults>
</compile_context>

<pallas_src>
import functools

import jax
import jax.numpy as jnp
from jax.experimental import pallas as pl
from jax.experimental.pallas import tpu as pltpu

# ---- model dims ----
CH, H, W = 1, 16, 16          # grayscale image (Draw() squeezes N and C)
IN_DIM = CH * H * W           # 256
HIDDEN = 128
LATENT = 2                    # latent_dim=2


def _pick_tm():
    """MXU-native row tile: 256 on v6e/v7x (2x256^2 MXU), 128 otherwise."""
    try:
        kind = jax.devices()[0].device_kind.lower()
    except Exception:
        return 128
    return 256 if ("v6" in kind or "v7" in kind) else 128


def vae_forward_kernel(x_ref,
                       we1_ref, be1_ref, we2_ref, be2_ref,
                       wf_ref, bf_ref, wd2_ref, bd2_ref,
                       z_ref, rec_ref):
    """One batch-tile of the fused VAE forward.

    x_ref: [TM, IN_DIM] bf16.  Weights bf16 (except tiny we2/biases, f32).
    Matmuls accumulate in f32; elementwise math stays f32.
    """
    # ---- Encoder fc1 + ReLU ----
    h = jnp.dot(x_ref[...], we1_ref[...], preferred_element_type=jnp.float32)
    h = jnp.maximum(h + be1_ref[...], 0.0)                    # [TM, HIDDEN] f32

    # ---- latent z (tiny N=2 matmul kept only to materialize the output) ----
    z_ref[...] = (jnp.dot(h, we2_ref[...],
                          preferred_element_type=jnp.float32) + be2_ref[...])

    # ---- fused Encoder.fc2 @ Decoder.fc1 (no nonlinearity between them) ----
    h2 = jnp.dot(h.astype(jnp.bfloat16), wf_ref[...],
                 preferred_element_type=jnp.float32)
    h2 = jnp.maximum(h2 + bf_ref[...], 0.0)                   # [TM, HIDDEN] f32

    # ---- Decoder fc2 + Tanh ----
    rec = jnp.dot(h2.astype(jnp.bfloat16), wd2_ref[...],
                  preferred_element_type=jnp.float32)
    rec_ref[...] = jnp.tanh(rec + bd2_ref[...])               # [TM, IN_DIM] f32


@functools.partial(jax.jit, static_argnames=("tm",))
def _vae_forward_impl(x_nchw, params, tm):
    we1, be1, we2, be2, wd1, bd1, wd2, bd2 = params
    b = x_nchw.shape[0]
    b_pad = ((b + tm - 1) // tm) * tm

    x = x_nchw.reshape(b, -1).astype(jnp.bfloat16)            # [B, IN_DIM]
    x = jnp.pad(x, ((0, b_pad - b), (0, 0)))

    # Fold Encoder.fc2 into Decoder.fc1 (exact up to FP rounding) and cast the
    # big matmul weights to bf16; biases and the tiny we2 stay f32.
    wf = (we2 @ wd1).astype(jnp.bfloat16)                     # [HIDDEN, HIDDEN]
    bf = be2 @ wd1 + bd1                                      # [1, HIDDEN] f32
    we1b = we1.astype(jnp.bfloat16)
    wd2b = wd2.astype(jnp.bfloat16)

    def resident(arr):
        # Full-array block, constant block index -> stays VMEM-resident.
        return pl.BlockSpec(arr.shape, lambda i: (0, 0))

    flops = 2 * b_pad * (IN_DIM * HIDDEN + HIDDEN * LATENT
                         + HIDDEN * HIDDEN + HIDDEN * IN_DIM)
    bytes_accessed = (
        b_pad * IN_DIM * 2                                    # x (bf16 in)
        + (we1b.size + wf.size + wd2b.size) * 2               # bf16 weights
        + (be1.size + we2.size + be2.size + bf.size + bd2.size) * 4
        + b_pad * (LATENT + IN_DIM) * 4)                      # f32 outputs

    z, rec = pl.pallas_call(
        vae_forward_kernel,
        out_shape=(
            jax.ShapeDtypeStruct((b_pad, LATENT), jnp.float32),
            jax.ShapeDtypeStruct((b_pad, IN_DIM), jnp.float32),
        ),
        grid=(b_pad // tm,),
        in_specs=[
            pl.BlockSpec((tm, IN_DIM), lambda i: (i, 0)),     # x batch tile
            resident(we1b), resident(be1),
            resident(we2), resident(be2),
            resident(wf), resident(bf),
            resident(wd2b), resident(bd2),
        ],
        out_specs=(
            pl.BlockSpec((tm, LATENT), lambda i: (i, 0)),
            pl.BlockSpec((tm, IN_DIM), lambda i: (i, 0)),
        ),
        compiler_params=pltpu.CompilerParams(
            dimension_semantics=("parallel",)),
        cost_estimate=pl.CostEstimate(
            flops=flops,
            transcendentals=b_pad * IN_DIM,
            bytes_accessed=bytes_accessed),
    )(x, we1b, be1, we2, be2, wf, bf, wd2b, bd2)

    return z[:b], rec[:b]


def vae_forward(x_nchw, params):
    """Reproduces VAE.forward: returns [x[:, 0], x[:, 1], recon]."""
    b, c, h, w = x_nchw.shape
    z, rec = _vae_forward_impl(x_nchw, params, _pick_tm())
    return [z[:, 0], z[:, 1], rec.reshape(b, c, h, w)]


def vae_reference(x_nchw, params):
    """Pure-JAX f32 reference (un-fused, un-quantized) for tolerance checks."""
    we1, be1, we2, be2, wd1, bd1, wd2, bd2 = params
    b = x_nchw.shape[0]
    xf = x_nchw.reshape(b, -1).astype(jnp.float32)
    h = jnp.maximum(xf @ we1 + be1, 0.0)
    z = h @ we2 + be2
    h2 = jnp.maximum(z @ wd1 + bd1, 0.0)
    rec = jnp.tanh(h2 @ wd2 + bd2)
    return z, rec.reshape(x_nchw.shape)


def init_params(key):
    """Deterministic synthetic parameter init (PyTorch-Linear-like scaling)."""
    ks = jax.random.split(key, 8)

    def lin(kw, kb, fan_in, fan_out):
        bound = 1.0 / jnp.sqrt(fan_in)
        w = jax.random.uniform(kw, (fan_in, fan_out), jnp.float32, -bound, bound)
        b = jax.random.uniform(kb, (1, fan_out), jnp.float32, -bound, bound)
        return w, b

    we1, be1 = lin(ks[0], ks[1], IN_DIM, HIDDEN)     # Encoder.fc1
    we2, be2 = lin(ks[2], ks[3], HIDDEN, LATENT)     # Encoder.fc2 (latent)
    wd1, bd1 = lin(ks[4], ks[5], LATENT, HIDDEN)     # Decoder.fc1
    wd2, bd2 = lin(ks[6], ks[7], HIDDEN, IN_DIM)     # Decoder.fc2 (recon)
    return (we1, be1, we2, be2, wd1, bd1, wd2, bd2)


if __name__ == "__main__":
    key = jax.random.PRNGKey(0)
    k_x, k_p, k_x2 = jax.random.split(key, 3)

    params = init_params(k_p)

    # Small-shape smoke test (batch=2, as in the module's typical single-image
    # use).  The wrapper pads the batch to one MXU-native tile.
    x = jax.random.uniform(k_x, (2, CH, H, W), jnp.float32, -1.0, 1.0)
    z0, z1, recon = vae_forward(x, params)
    jax.block_until_ready(recon)

    assert z0.shape == (2,) and z1.shape == (2,)
    assert recon.shape == (2, CH, H, W)
    assert bool(jnp.all(jnp.isfinite(recon)))

    # Tolerance check vs f32 reference (bf16 matmul weights + fused fc2@fc1
    # change rounding slightly).
    z_ref, rec_ref = vae_reference(x, params)
    assert float(jnp.max(jnp.abs(recon - rec_ref))) < 0.1
    assert float(jnp.max(jnp.abs(jnp.stack([z0, z1], axis=1) - z_ref))) < 0.1

    # Larger batch: exercises the batch grid (>1 MXU-native row tile) and, on
    # v7x, both TensorCores via the parallel batch axis.
    tm = _pick_tm()
    xb = jax.random.uniform(k_x2, (2 * tm, CH, H, W), jnp.float32, -1.0, 1.0)
    z0b, z1b, reconb = vae_forward(xb, params)
    jax.block_until_ready(reconb)
    assert reconb.shape == (2 * tm, CH, H, W)
    assert bool(jnp.all(jnp.isfinite(reconb)))

    print("KERNEL_OK")
</pallas_src>

<mosaic_0001>
module attributes {stable_mosaic.version = 11 : i64} {
  func.func @vae_forward_kernel(%arg0: i32, %arg1: memref<128x256xbf16, #tpu.memory_space<vmem>>, %arg2: memref<256x128xbf16, #tpu.memory_space<vmem>>, %arg3: memref<1x128xf32, #tpu.memory_space<vmem>>, %arg4: memref<128x2xf32, #tpu.memory_space<vmem>>, %arg5: memref<1x2xf32, #tpu.memory_space<vmem>>, %arg6: memref<128x128xbf16, #tpu.memory_space<vmem>>, %arg7: memref<1x128xf32, #tpu.memory_space<vmem>>, %arg8: memref<128x256xbf16, #tpu.memory_space<vmem>>, %arg9: memref<1x256xf32, #tpu.memory_space<vmem>>, %arg10: memref<128x2xf32, #tpu.memory_space<vmem>>, %arg11: memref<128x256xf32, #tpu.memory_space<vmem>>) attributes {dimension_semantics = [#tpu.dimension_semantics<parallel>], iteration_bounds = array<i64: 1>, scalar_prefetch = 0 : i64, scratch_operands = 0 : i64, tpu.core_type = #tpu.core_type<tc>, window_params = [{transform_indices = @transform_0, window_bounds = array<i64: 128, 256>}, {pipeline_mode = #tpu.pipeline_mode<synchronous>, transform_indices = @transform_1, window_bounds = array<i64: 256, 128>}, {pipeline_mode = #tpu.pipeline_mode<synchronous>, transform_indices = @transform_2, window_bounds = array<i64: 1, 128>}, {pipeline_mode = #tpu.pipeline_mode<synchronous>, transform_indices = @transform_3, window_bounds = array<i64: 128, 2>}, {pipeline_mode = #tpu.pipeline_mode<synchronous>, transform_indices = @transform_4, window_bounds = array<i64: 1, 2>}, {pipeline_mode = #tpu.pipeline_mode<synchronous>, transform_indices = @transform_5, window_bounds = array<i64: 128, 128>}, {pipeline_mode = #tpu.pipeline_mode<synchronous>, transform_indices = @transform_6, window_bounds = array<i64: 1, 128>}, {pipeline_mode = #tpu.pipeline_mode<synchronous>, transform_indices = @transform_7, window_bounds = array<i64: 128, 256>}, {pipeline_mode = #tpu.pipeline_mode<synchronous>, transform_indices = @transform_8, window_bounds = array<i64: 1, 256>}, {transform_indices = @transform_9, window_bounds = array<i64: 128, 2>}, {transform_indices = @transform_10, window_bounds = array<i64: 128, 256>}]} {
    %c0 = arith.constant 0 : index
    %c0_0 = arith.constant 0 : index
    %0 = vector.load %arg1[%c0, %c0_0] : memref<128x256xbf16, #tpu.memory_space<vmem>>, vector<128x256xbf16>
    %c0_1 = arith.constant 0 : index
    %c0_2 = arith.constant 0 : index
    %1 = vector.load %arg2[%c0_1, %c0_2] : memref<256x128xbf16, #tpu.memory_space<vmem>>, vector<256x128xbf16>
    %cst = arith.constant dense<0.000000e+00> : vector<128x128xf32>
    %2 = tpu.matmul %0, %1, %cst {dimension_numbers = #tpu.dot_dimension_numbers<[1], [0], [0], [1], [0, 0, 1, 1], [], []>} : vector<128x256xbf16>, vector<256x128xbf16>, vector<128x128xf32> -> vector<128x128xf32>
    %c0_3 = arith.constant 0 : index
    %c0_4 = arith.constant 0 : index
    %3 = vector.load %arg3[%c0_3, %c0_4] : memref<1x128xf32, #tpu.memory_space<vmem>>, vector<1x128xf32>
    %4 = vector.broadcast %3 : vector<1x128xf32> to vector<128x128xf32>
    %5 = arith.addf %2, %4 : vector<128x128xf32>
    %cst_5 = arith.constant 0.000000e+00 : f32
    %6 = vector.broadcast %cst_5 : f32 to vector<128x128xf32>
    %7 = arith.maximumf %5, %6 : vector<128x128xf32>
    %c0_6 = arith.constant 0 : index
    %c0_7 = arith.constant 0 : index
    %8 = vector.load %arg4[%c0_6, %c0_7] : memref<128x2xf32, #tpu.memory_space<vmem>>, vector<128x2xf32>
    %cst_8 = arith.constant dense<0.000000e+00> : vector<128x2xf32>
    %9 = tpu.matmul %7, %8, %cst_8 {dimension_numbers = #tpu.dot_dimension_numbers<[1], [0], [0], [1], [0, 0, 1, 1], [], []>} : vector<128x128xf32>, vector<128x2xf32>, vector<128x2xf32> -> vector<128x2xf32>
    %c0_9 = arith.constant 0 : index
    %c0_10 = arith.constant 0 : index
    %10 = vector.load %arg5[%c0_9, %c0_10] : memref<1x2xf32, #tpu.memory_space<vmem>>, vector<1x2xf32>
    %11 = vector.broadcast %10 : vector<1x2xf32> to vector<128x2xf32>
    %12 = arith.addf %9, %11 : vector<128x2xf32>
    %c0_11 = arith.constant 0 : index
    %c0_12 = arith.constant 0 : index
    %13 = vector.load %arg10[%c0_11, %c0_12] : memref<128x2xf32, #tpu.memory_space<vmem>>, vector<128x2xf32>
    tpu.vector_store %arg10[%c0_11, %c0_12], %12 {strides = array<i32>} : memref<128x2xf32, #tpu.memory_space<vmem>>, vector<128x2xf32>,
    %14 = arith.truncf %7 : vector<128x128xf32> to vector<128x128xbf16>
    %c0_13 = arith.constant 0 : index
    %c0_14 = arith.constant 0 : index
    %15 = vector.load %arg6[%c0_13, %c0_14] : memref<128x128xbf16, #tpu.memory_space<vmem>>, vector<128x128xbf16>
    %cst_15 = arith.constant dense<0.000000e+00> : vector<128x128xf32>
    %16 = tpu.matmul %14, %15, %cst_15 {dimension_numbers = #tpu.dot_dimension_numbers<[1], [0], [0], [1], [0, 0, 1, 1], [], []>} : vector<128x128xbf16>, vector<128x128xbf16>, vector<128x128xf32> -> vector<128x128xf32>
    %c0_16 = arith.constant 0 : index
    %c0_17 = arith.constant 0 : index
    %17 = vector.load %arg7[%c0_16, %c0_17] : memref<1x128xf32, #tpu.memory_space<vmem>>, vector<1x128xf32>
    %18 = vector.broadcast %17 : vector<1x128xf32> to vector<128x128xf32>
    %19 = arith.addf %16, %18 : vector<128x128xf32>
    %cst_18 = arith.constant 0.000000e+00 : f32
    %20 = vector.broadcast %cst_18 : f32 to vector<128x128xf32>
    %21 = arith.maximumf %19, %20 : vector<128x128xf32>
    %22 = arith.truncf %21 : vector<128x128xf32> to vector<128x128xbf16>
    %c0_19 = arith.constant 0 : index
    %c0_20 = arith.constant 0 : index
    %23 = vector.load %arg8[%c0_19, %c0_20] : memref<128x256xbf16, #tpu.memory_space<vmem>>, vector<128x256xbf16>
    %cst_21 = arith.constant dense<0.000000e+00> : vector<128x256xf32>
    %24 = tpu.matmul %22, %23, %cst_21 {dimension_numbers = #tpu.dot_dimension_numbers<[1], [0], [0], [1], [0, 0, 1, 1], [], []>} : vector<128x128xbf16>, vector<128x256xbf16>, vector<128x256xf32> -> vector<128x256xf32>
    %c0_22 = arith.constant 0 : index
    %c0_23 = arith.constant 0 : index
    %25 = vector.load %arg9[%c0_22, %c0_23] : memref<1x256xf32, #tpu.memory_space<vmem>>, vector<1x256xf32>
    %26 = vector.broadcast %25 : vector<1x256xf32> to vector<128x256xf32>
    %27 = arith.addf %24, %26 : vector<128x256xf32>
    %28 = math.tanh %27 : vector<128x256xf32>
    %c0_24 = arith.constant 0 : index
    %c0_25 = arith.constant 0 : index
    %29 = vector.load %arg11[%c0_24, %c0_25] : memref<128x256xf32, #tpu.memory_space<vmem>>, vector<128x256xf32>
    tpu.vector_store %arg11[%c0_24, %c0_25], %28 {strides = array<i32>} : memref<128x256xf32, #tpu.memory_space<vmem>>, vector<128x256xf32>,
    return
  }
  func.func @transform_0(%arg0: i32) -> (i32, i32) {
    %c0_i32 = arith.constant 0 : i32
    %c0_i32_0 = arith.constant 0 : i32
    return %arg0, %c0_i32 : i32, i32
  }
  func.func @transform_1(%arg0: i32) -> (i32, i32) {
    %c0_i32 = arith.constant 0 : i32
    %c0_i32_0 = arith.constant 0 : i32
    %c0_i32_1 = arith.constant 0 : i32
    return %c0_i32, %c0_i32_0 : i32, i32
  }
  func.func @transform_2(%arg0: i32) -> (i32, i32) {
    %c0_i32 = arith.constant 0 : i32
    %c0_i32_0 = arith.constant 0 : i32
    %c0_i32_1 = arith.constant 0 : i32
    return %c0_i32, %c0_i32_0 : i32, i32
  }
  func.func @transform_3(%arg0: i32) -> (i32, i32) {
    %c0_i32 = arith.constant 0 : i32
    %c0_i32_0 = arith.constant 0 : i32
    %c0_i32_1 = arith.constant 0 : i32
    return %c0_i32, %c0_i32_0 : i32, i32
  }
  func.func @transform_4(%arg0: i32) -> (i32, i32) {
    %c0_i32 = arith.constant 0 : i32
    %c0_i32_0 = arith.constant 0 : i32
    %c0_i32_1 = arith.constant 0 : i32
    return %c0_i32, %c0_i32_0 : i32, i32
  }
  func.func @transform_5(%arg0: i32) -> (i32, i32) {
    %c0_i32 = arith.constant 0 : i32
    %c0_i32_0 = arith.constant 0 : i32
    %c0_i32_1 = arith.constant 0 : i32
    return %c0_i32, %c0_i32_0 : i32, i32
  }
  func.func @transform_6(%arg0: i32) -> (i32, i32) {
    %c0_i32 = arith.constant 0 : i32
    %c0_i32_0 = arith.constant 0 : i32
    %c0_i32_1 = arith.constant 0 : i32
    return %c0_i32, %c0_i32_0 : i32, i32
  }
  func.func @transform_7(%arg0: i32) -> (i32, i32) {
    %c0_i32 = arith.constant 0 : i32
    %c0_i32_0 = arith.constant 0 : i32
    %c0_i32_1 = arith.constant 0 : i32
    return %c0_i32, %c0_i32_0 : i32, i32
  }
  func.func @transform_8(%arg0: i32) -> (i32, i32) {
    %c0_i32 = arith.constant 0 : i32
    %c0_i32_0 = arith.constant 0 : i32
    %c0_i32_1 = arith.constant 0 : i32
    return %c0_i32, %c0_i32_0 : i32, i32
  }
  func.func @transform_9(%arg0: i32) -> (i32, i32) {
    %c0_i32 = arith.constant 0 : i32
    %c0_i32_0 = arith.constant 0 : i32
    return %arg0, %c0_i32 : i32, i32
  }
  func.func @transform_10(%arg0: i32) -> (i32, i32) {
    %c0_i32 = arith.constant 0 : i32
    %c0_i32_0 = arith.constant 0 : i32
    return %arg0, %c0_i32 : i32, i32
  }
}

</mosaic_0001>

<llo_original>
// kernel: _vae_forward_impl.1
$region0: #{_vae_forward_impl.1}
  #allocation0 [shape = 'u32[]', space=smem, size = 0x4, offset = 0x4, fixed_abs, tag = 'smem constant byte address 0x4 - core index']
  #allocation1 [shape = 'u32[72,128]{1,0:T(1,128)}', space=vmem, size = 0x9000, scoped, tag = 'internal scratch']
  %s0 = inlined_call_operand.vmem [shape: bf16[128,256], index: 0, kind: input, shape index: {}]
  %s1 = inlined_call_operand.vmem [shape: bf16[256,128], index: 1, kind: input, shape index: {}]
  %s2 = inlined_call_operand.vmem [shape: f32[1,128], index: 2, kind: input, shape index: {}]
  %s3 = inlined_call_operand.vmem [shape: f32[128,2], index: 3, kind: input, shape index: {}]
  %s4 = inlined_call_operand.vmem [shape: f32[1,2], index: 4, kind: input, shape index: {}]
  %s5 = inlined_call_operand.vmem [shape: bf16[128,128], index: 5, kind: input, shape index: {}]
  %s6 = inlined_call_operand.vmem [shape: f32[1,128], index: 6, kind: input, shape index: {}]
  %s7 = inlined_call_operand.vmem [shape: bf16[128,256], index: 7, kind: input, shape index: {}]
  %s8 = inlined_call_operand.vmem [shape: f32[1,256], index: 8, kind: input, shape index: {}]
  %s9 = inlined_call_operand.vmem [shape: f32[128,2], index: 9, kind: output, shape index: {0}]
  %s10 = inlined_call_operand.vmem [shape: f32[128,256], index: 10, kind: output, shape index: {1}]
  %11 = xla_tuple %s9, %s10
  %s12 = sld [smem:[#allocation0]]
  $region54: #{_vae_forward_impl.1} parent=0
    _
  %s14 = ssub.s32 1, %s12
  %s15 = scalar_select 0, %s14, %s12
  // Predicated region
  $region2: #{_vae_forward_impl.1} parent=0 // pred_check
    _
  $region3: #{_vae_forward_impl.1} parent=0 // pred_check_branch
    %17 = sbr.rel (0) target = $region5
  $region4: #{_vae_forward_impl.1} parent=0 // pred_region
    _
  $region5: #{_vae_forward_impl.1} parent=0 // pred_fallthru
    _
  // Predicated region
  $region6: #{_vae_forward_impl.1} parent=0 // pred_check
    _
  $region7: #{_vae_forward_impl.1} parent=0 // pred_check_branch
    %19 = sbr.rel (0) target = $region9
  $region8: #{_vae_forward_impl.1} parent=0 // pred_region
    _
  $region9: #{_vae_forward_impl.1} parent=0 // pred_fallthru
    _
  // Predicated region
  $region10: #{_vae_forward_impl.1} parent=0 // pred_check
    _
  $region11: #{_vae_forward_impl.1} parent=0 // pred_check_branch
    %21 = sbr.rel (0) target = $region13
  $region12: #{_vae_forward_impl.1} parent=0 // pred_region
    _
  $region13: #{_vae_forward_impl.1} parent=0 // pred_fallthru
    _
  // Predicated region
  $region14: #{_vae_forward_impl.1} parent=0 // pred_check
    _
  $region15: #{_vae_forward_impl.1} parent=0 // pred_check_branch
    %23 = sbr.rel (0) target = $region17
  $region16: #{_vae_forward_impl.1} parent=0 // pred_region
    _
  $region17: #{_vae_forward_impl.1} parent=0 // pred_fallthru
    _
  // Predicated region
  $region18: #{_vae_forward_impl.1} parent=0 // pred_check
    _
  $region19: #{_vae_forward_impl.1} parent=0 // pred_check_branch
    %25 = sbr.rel (0) target = $region21
  $region20: #{_vae_forward_impl.1} parent=0 // pred_region
    _
  $region21: #{_vae_forward_impl.1} parent=0 // pred_fallthru
    _
  // Predicated region
  $region22: #{_vae_forward_impl.1} parent=0 // pred_check
    _
  $region23: #{_vae_forward_impl.1} parent=0 // pred_check_branch
    %27 = sbr.rel (0) target = $region25
  $region24: #{_vae_forward_impl.1} parent=0 // pred_region
    _
  $region25: #{_vae_forward_impl.1} parent=0 // pred_fallthru
    _
  // Predicated region
  $region26: #{_vae_forward_impl.1} parent=0 // pred_check
    _
  $region27: #{_vae_forward_impl.1} parent=0 // pred_check_branch
    %29 = sbr.rel (0) target = $region29
  $region28: #{_vae_forward_impl.1} parent=0 // pred_region
    _
  $region29: #{_vae_forward_impl.1} parent=0 // pred_fallthru
    _
  // Predicated region
  $region30: #{_vae_forward_impl.1} parent=0 // pred_check
    _
  $region31: #{_vae_forward_impl.1} parent=0 // pred_check_branch
    %31 = sbr.rel (0) target = $region33
  $region32: #{_vae_forward_impl.1} parent=0 // pred_region
    _
  $region33: #{_vae_forward_impl.1} parent=0 // pred_fallthru
    _
  // Predicated region
  $region34: #{_vae_forward_impl.1} parent=0 // pred_check
    _
  $region35: #{_vae_forward_impl.1} parent=0 // pred_check_branch
    %33 = sbr.rel (0) target = $region37
  $region36: #{_vae_forward_impl.1} parent=0 // pred_region
    _
  $region37: #{_vae_forward_impl.1} parent=0 // pred_fallthru
    _
  %v34 = vld [vmem:[%s0] sm:$0xff]
  %v35 = vld [vmem:[%s0 + $0x8] sm:$0xff]
  %v36 = vld [vmem:[%s0 + $0x10] sm:$0xff]
  %v37 = vld [vmem:[%s0 + $0x18] sm:$0xff]
  %v38 = vld [vmem:[%s0 + $0x20] sm:$0xff]
  %v39 = vld [vmem:[%s0 + $0x28] sm:$0xff]
  %v40 = vld [vmem:[%s0 + $0x30] sm:$0xff]
  %v41 = vld [vmem:[%s0 + $0x38] sm:$0xff]
  %v42 = vld [vmem:[%s0 + $0x40] sm:$0xff]
  %v43 = vld [vmem:[%s0 + $0x48] sm:$0xff]
  %v44 = vld [vmem:[%s0 + $0x50] sm:$0xff]
  %v45 = vld [vmem:[%s0 + $0x58] sm:$0xff]
  %v46 = vld [vmem:[%s0 + $0x60] sm:$0xff]
  %v47 = vld [vmem:[%s0 + $0x68] sm:$0xff]
  %v48 = vld [vmem:[%s0 + $0x70] sm:$0xff]
  %v49 = vld [vmem:[%s0 + $0x78] sm:$0xff]
  %v50 = vld [vmem:[%s1] sm:$0xf]
  %v51 = vld [vmem:[%s1 + $0x4] sm:$0xf]
  %v52 = vld [vmem:[%s1 + $0x8] sm:$0xf]
  %v53 = vld [vmem:[%s1 + $0xc] sm:$0xf]
  %v54 = vld [vmem:[%s1 + $0x10] sm:$0xf]
  %v55 = vld [vmem:[%s1 + $0x14] sm:$0xf]
  %v56 = vld [vmem:[%s1 + $0x18] sm:$0xf]
  %v57 = vld [vmem:[%s1 + $0x1c] sm:$0xf]
  %v58 = vld [vmem:[%s1 + $0x20] sm:$0xf]
  %v59 = vld [vmem:[%s1 + $0x24] sm:$0xf]
  %v60 = vld [vmem:[%s1 + $0x28] sm:$0xf]
  %v61 = vld [vmem:[%s1 + $0x2c] sm:$0xf]
  %v62 = vld [vmem:[%s1 + $0x30] sm:$0xf]
  %v63 = vld [vmem:[%s1 + $0x34] sm:$0xf]
  %v64 = vld [vmem:[%s1 + $0x38] sm:$0xf]
  %v65 = vld [vmem:[%s1 + $0x3c] sm:$0xf]
  %v66 = vld [vmem:[%s1 + $0x40] sm:$0xf]
  %v67 = vld [vmem:[%s1 + $0x44] sm:$0xf]
  %v68 = vld [vmem:[%s1 + $0x48] sm:$0xf]
  %v69 = vld [vmem:[%s1 + $0x4c] sm:$0xf]
  %v70 = vld [vmem:[%s1 + $0x50] sm:$0xf]
  %v71 = vld [vmem:[%s1 + $0x54] sm:$0xf]
  %v72 = vld [vmem:[%s1 + $0x58] sm:$0xf]
  %v73 = vld [vmem:[%s1 + $0x5c] sm:$0xf]
  %v74 = vld [vmem:[%s1 + $0x60] sm:$0xf]
  %v75 = vld [vmem:[%s1 + $0x64] sm:$0xf]
  %v76 = vld [vmem:[%s1 + $0x68] sm:$0xf]
  %v77 = vld [vmem:[%s1 + $0x6c] sm:$0xf]
  %v78 = vld [vmem:[%s1 + $0x70] sm:$0xf]
  %v79 = vld [vmem:[%s1 + $0x74] sm:$0xf]
  %v80 = vld [vmem:[%s1 + $0x78] sm:$0xf]
  %v81 = vld [vmem:[%s1 + $0x7c] sm:$0xf]
  %v82 = vld [vmem:[%s2] sm:$0x1]
  %v84 = vperm.slane %v82, 0
  %v102 = vunpack.c.l.b16 %v34
  %v103 = vunpack.c.h.b16 %v34
  %v104 = vunpack.c.l.b16 %v35
  %v105 = vunpack.c.h.b16 %v35
  %v106 = vunpack.c.l.b16 %v36
  %v107 = vunpack.c.h.b16 %v36
  %v108 = vunpack.c.l.b16 %v37
  %v109 = vunpack.c.h.b16 %v37
  %v110 = vunpack.c.l.b16 %v38
  %v111 = vunpack.c.h.b16 %v38
  %v112 = vunpack.c.l.b16 %v39
  %v113 = vunpack.c.h.b16 %v39
  %v114 = vunpack.c.l.b16 %v40
  %v115 = vunpack.c.h.b16 %v40
  %v116 = vunpack.c.l.b16 %v41
  %v117 = vunpack.c.h.b16 %v41
  %v118 = vunpack.c.l.b16 %v42
  %v119 = vunpack.c.h.b16 %v42
  %v120 = vunpack.c.l.b16 %v43
  %v121 = vunpack.c.h.b16 %v43
  %v122 = vunpack.c.l.b16 %v44
  %v123 = vunpack.c.h.b16 %v44
  %v124 = vunpack.c.l.b16 %v45
  %v125 = vunpack.c.h.b16 %v45
  %v126 = vunpack.c.l.b16 %v46
  %v127 = vunpack.c.h.b16 %v46
  %v128 = vunpack.c.l.b16 %v47
  %v129 = vunpack.c.h.b16 %v47
  %v130 = vunpack.c.l.b16 %v48
  %v131 = vunpack.c.h.b16 %v48
  %v132 = vunpack.c.l.b16 %v49
  %v133 = vunpack.c.h.b16 %v49
  %v134 = vpack.c.b16 %v104, %v102
  %v135 = vpack.c.b16 %v105, %v103
  %v136 = vpack.c.b16 %v108, %v106
  %v137 = vpack.c.b16 %v109, %v107
  %v138 = vpack.c.b16 %v112, %v110
  %v139 = vpack.c.b16 %v113, %v111
  %v140 = vpack.c.b16 %v116, %v114
  %v141 = vpack.c.b16 %v117, %v115
  %v142 = vpack.c.b16 %v120, %v118
  %v143 = vpack.c.b16 %v121, %v119
  %v144 = vpack.c.b16 %v124, %v122
  %v145 = vpack.c.b16 %v125, %v123
  %v146 = vpack.c.b16 %v128, %v126
  %v147 = vpack.c.b16 %v129, %v127
  %v148 = vpack.c.b16 %v132, %v130
  %v149 = vpack.c.b16 %v133, %v131
  %v198 = vunpack.c.l.b16 %v50
  %v199 = vunpack.c.l.b16 %v51
  %v200 = vunpack.c.l.b16 %v52
  %v201 = vunpack.c.l.b16 %v53
  %v202 = vunpack.c.l.b16 %v54
  %v203 = vunpack.c.l.b16 %v55
  %v204 = vunpack.c.l.b16 %v56
  %v205 = vunpack.c.l.b16 %v57
  %v206 = vunpack.c.l.b16 %v58
  %v207 = vunpack.c.l.b16 %v59
  %v208 = vunpack.c.l.b16 %v60
  %v209 = vunpack.c.l.b16 %v61
  %v210 = vunpack.c.l.b16 %v62
  %v211 = vunpack.c.l.b16 %v63
  %v212 = vunpack.c.l.b16 %v64
  %v213 = vunpack.c.l.b16 %v65
  %v214 = vunpack.c.l.b16 %v66
  %v215 = vunpack.c.l.b16 %v67
  %v216 = vunpack.c.l.b16 %v68
  %v217 = vunpack.c.l.b16 %v69
  %v218 = vunpack.c.l.b16 %v70
  %v219 = vunpack.c.l.b16 %v71
  %v220 = vunpack.c.l.b16 %v72
  %v221 = vunpack.c.l.b16 %v73
  %v222 = vunpack.c.l.b16 %v74
  %v223 = vunpack.c.l.b16 %v75
  %v224 = vunpack.c.l.b16 %v76
  %v225 = vunpack.c.l.b16 %v77
  %v226 = vunpack.c.l.b16 %v78
  %v227 = vunpack.c.l.b16 %v79
  %v228 = vunpack.c.l.b16 %v80
  %v229 = vunpack.c.l.b16 %v81
  %v230 = vpack.c.b16 %v199, %v198
  %v231 = vpack.c.b16 %v201, %v200
  %v232 = vpack.c.b16 %v203, %v202
  %v233 = vpack.c.b16 %v205, %v204
  %v234 = vpack.c.b16 %v207, %v206
  %v235 = vpack.c.b16 %v209, %v208
  %v236 = vpack.c.b16 %v211, %v210
  %v237 = vpack.c.b16 %v213, %v212
  %v238 = vpack.c.b16 %v215, %v214
  %v239 = vpack.c.b16 %v217, %v216
  %v240 = vpack.c.b16 %v219, %v218
  %v241 = vpack.c.b16 %v221, %v220
  %v242 = vpack.c.b16 %v223, %v222
  %v243 = vpack.c.b16 %v225, %v224
  %v244 = vpack.c.b16 %v227, %v226
  %v245 = vpack.c.b16 %v229, %v228
  %262 = vmatpush.bf16.msra.mxu0 %v237
  %263 = vmatpush.bf16.msra.mxu0 %v236
  %264 = vmatpush.bf16.msra.mxu0 %v235
  %265 = vmatpush.bf16.msra.mxu0 %v234
  %266 = vmatpush.bf16.msra.mxu0 %v233
  %267 = vmatpush.bf16.msra.mxu0 %v232
  %268 = vmatpush.bf16.msra.mxu0 %v231
  %269 = vmatpush.bf16.msra.mxu0 %v230
  %270 = vmatmul.bf16.gmra.mxu0 %v134
  %v271 = vpop.f32.mrf.mxu0
  %v272 = vadd.f32 %v84, %v271
  %v273 = vpop.f32.mrf.mxu0
  %v274 = vadd.f32 %v84, %v273
  %275 = vmatmul.bf16.gmra.mxu0 %v136
  %v276 = vpop.f32.mrf.mxu0
  %v277 = vadd.f32 %v84, %v276
  %v278 = vpop.f32.mrf.mxu0
  %v279 = vadd.f32 %v84, %v278
  %280 = vmatmul.bf16.gmra.mxu0 %v138
  %v281 = vpop.f32.mrf.mxu0
  %v282 = vadd.f32 %v84, %v281
  %v283 = vpop.f32.mrf.mxu0
  %v284 = vadd.f32 %v84, %v283
  %285 = vmatmul.bf16.gmra.mxu0 %v140
  %v286 = vpop.f32.mrf.mxu0
  %v287 = vadd.f32 %v84, %v286
  %v288 = vpop.f32.mrf.mxu0
  %v289 = vadd.f32 %v84, %v288
  %290 = vmatmul.bf16.gmra.mxu0 %v142
  %v291 = vpop.f32.mrf.mxu0
  %v292 = vadd.f32 %v84, %v291
  %v293 = vpop.f32.mrf.mxu0
  %v294 = vadd.f32 %v84, %v293
  %295 = vmatmul.bf16.gmra.mxu0 %v144
  %v296 = vpop.f32.mrf.mxu0
  %v297 = vadd.f32 %v84, %v296
  %v298 = vpop.f32.mrf.mxu0
  %v299 = vadd.f32 %v84, %v298
  %300 = vmatmul.bf16.gmra.mxu0 %v146
  %v301 = vpop.f32.mrf.mxu0
  %v302 = vadd.f32 %v84, %v301
  %v303 = vpop.f32.mrf.mxu0
  %v304 = vadd.f32 %v84, %v303
  %305 = vmatmul.bf16.gmra.mxu0 %v148
  %v306 = vpop.f32.mrf.mxu0
  %v307 = vadd.f32 %v84, %v306
  %v308 = vpop.f32.mrf.mxu0
  %v309 = vadd.f32 %v84, %v308
  %310 = vdwg.mxu0
  %311 = vmatpush.bf16.msra.mxu0 %v245
  %312 = vmatpush.bf16.msra.mxu0 %v244
  %313 = vmatpush.bf16.msra.mxu0 %v243
  %314 = vmatpush.bf16.msra.mxu0 %v242
  %315 = vmatpush.bf16.msra.mxu0 %v241
  %316 = vmatpush.bf16.msra.mxu0 %v240
  %317 = vmatpush.bf16.msra.mxu0 %v239
  %318 = vmatpush.bf16.msra.mxu0 %v238
  %319 = vmatmul.bf16.gmra.mxu0 %v135
  %v320 = vpop.f32.mrf.mxu0
  %v321 = vadd.f32 %v272, %v320
  %v322 = vpop.f32.mrf.mxu0
  %v323 = vadd.f32 %v274, %v322
  %324 = vmatmul.bf16.gmra.mxu0 %v137
  %v325 = vpop.f32.mrf.mxu0
  %v326 = vadd.f32 %v277, %v325
  %v327 = vpop.f32.mrf.mxu0
  %v328 = vadd.f32 %v279, %v327
  %329 = vmatmul.bf16.gmra.mxu0 %v139
  %v330 = vpop.f32.mrf.mxu0
  %v331 = vadd.f32 %v282, %v330
  %v332 = vpop.f32.mrf.mxu0
  %v333 = vadd.f32 %v284, %v332
  %334 = vmatmul.bf16.gmra.mxu0 %v141
  %v335 = vpop.f32.mrf.mxu0
  %v336 = vadd.f32 %v287, %v335
  %v337 = vpop.f32.mrf.mxu0
  %v338 = vadd.f32 %v289, %v337
  %339 = vmatmul.bf16.gmra.mxu0 %v143
  %v340 = vpop.f32.mrf.mxu0
  %v341 = vadd.f32 %v292, %v340
  %v342 = vpop.f32.mrf.mxu0
  %v343 = vadd.f32 %v294, %v342
  %344 = vmatmul.bf16.gmra.mxu0 %v145
  %v345 = vpop.f32.mrf.mxu0
  %v346 = vadd.f32 %v297, %v345
  %v347 = vpop.f32.mrf.mxu0
  %v348 = vadd.f32 %v299, %v347
  %349 = vmatmul.bf16.gmra.mxu0 %v147
  %v350 = vpop.f32.mrf.mxu0
  %v351 = vadd.f32 %v302, %v350
  %v352 = vpop.f32.mrf.mxu0
  %v353 = vadd.f32 %v304, %v352
  %354 = vmatmul.bf16.gmra.mxu0 %v149
  %v355 = vpop.f32.mrf.mxu0
  %v356 = vadd.f32 %v307, %v355
  %v357 = vpop.f32.mrf.mxu0
  %v358 = vadd.f32 %v309, %v357
  %359 = vdwg.mxu0
  %v360 = vmax.f32 %v321, 0.0
  %v361 = vmax.f32 %v323, 0.0
  %v362 = vmax.f32 %v326, 0.0
  %v363 = vmax.f32 %v328, 0.0
  %v364 = vmax.f32 %v331, 0.0
  %v365 = vmax.f32 %v333, 0.0
  %v366 = vmax.f32 %v336, 0.0
  %v367 = vmax.f32 %v338, 0.0
  %v368 = vmax.f32 %v341, 0.0
  %v369 = vmax.f32 %v343, 0.0
  %v370 = vmax.f32 %v346, 0.0
  %v371 = vmax.f32 %v348, 0.0
  %v372 = vmax.f32 %v351, 0.0
  %v373 = vmax.f32 %v353, 0.0
  %v374 = vmax.f32 %v356, 0.0
  %v375 = vmax.f32 %v358, 0.0
  %v376 = vld [vmem:[%s3] sm:$0xff]
  %v377 = vld [vmem:[%s3 + $0x8] sm:$0xff]
  %v378 = vld [vmem:[%s3 + $0x10] sm:$0xff]
  %v379 = vld [vmem:[%s3 + $0x18] sm:$0xff]
  %v380 = vld [vmem:[%s3 + $0x20] sm:$0xff]
  %v381 = vld [vmem:[%s3 + $0x28] sm:$0xff]
  %v382 = vld [vmem:[%s3 + $0x30] sm:$0xff]
  %v383 = vld [vmem:[%s3 + $0x38] sm:$0xff]
  %v384 = vld [vmem:[%s3 + $0x40] sm:$0xff]
  %v385 = vld [vmem:[%s3 + $0x48] sm:$0xff]
  %v386 = vld [vmem:[%s3 + $0x50] sm:$0xff]
  %v387 = vld [vmem:[%s3 + $0x58] sm:$0xff]
  %v388 = vld [vmem:[%s3 + $0x60] sm:$0xff]
  %v389 = vld [vmem:[%s3 + $0x68] sm:$0xff]
  %v390 = vld [vmem:[%s3 + $0x70] sm:$0xff]
  %v391 = vld [vmem:[%s3 + $0x78] sm:$0xff]
  %v392 = vld [vmem:[%s4] sm:$0x1]
  %v394 = vperm.slane %v392, 0
  %396 = vmatpush.msra.mxu0 %v391
  %397 = vmatpush.msra.mxu0 %v390
  %398 = vmatpush.msra.mxu0 %v389
  %399 = vmatpush.msra.mxu0 %v388
  %400 = vmatpush.msra.mxu0 %v387
  %401 = vmatpush.msra.mxu0 %v386
  %402 = vmatpush.msra.mxu0 %v385
  %403 = vmatpush.msra.mxu0 %v384
  %404 = vmatpush.msra.mxu0 %v383
  %405 = vmatpush.msra.mxu0 %v382
  %406 = vmatpush.msra.mxu0 %v381
  %407 = vmatpush.msra.mxu0 %v380
  %408 = vmatpush.msra.mxu0 %v379
  %409 = vmatpush.msra.mxu0 %v378
  %410 = vmatpush.msra.mxu0 %v377
  %411 = vmatpush.msra.mxu0 %v376
  %412 = vmatmul.f32.gmra.mxu0 %v360
  %v413 = vpop.f32.mrf.mxu0
  %v414 = vadd.f32 %v394, %v413
  %415 = vmatmul.f32.gmra.mxu0 %v361
  %v416 = vpop.f32.mrf.mxu0
  %v417 = vadd.f32 %v394, %v416
  %418 = vmatmul.f32.gmra.mxu0 %v362
  %v419 = vpop.f32.mrf.mxu0
  %v420 = vadd.f32 %v394, %v419
  %421 = vmatmul.f32.gmra.mxu0 %v363
  %v422 = vpop.f32.mrf.mxu0
  %v423 = vadd.f32 %v394, %v422
  %424 = vmatmul.f32.gmra.mxu0 %v364
  %v425 = vpop.f32.mrf.mxu0
  %v426 = vadd.f32 %v394, %v425
  %427 = vmatmul.f32.gmra.mxu0 %v365
  %v428 = vpop.f32.mrf.mxu0
  %v429 = vadd.f32 %v394, %v428
  %430 = vmatmul.f32.gmra.mxu0 %v366
  %v431 = vpop.f32.mrf.mxu0
  %v432 = vadd.f32 %v394, %v431
  %433 = vmatmul.f32.gmra.mxu0 %v367
  %v434 = vpop.f32.mrf.mxu0
  %v435 = vadd.f32 %v394, %v434
  %436 = vmatmul.f32.gmra.mxu0 %v368
  %v437 = vpop.f32.mrf.mxu0
  %v438 = vadd.f32 %v394, %v437
  %439 = vmatmul.f32.gmra.mxu0 %v369
  %v440 = vpop.f32.mrf.mxu0
  %v441 = vadd.f32 %v394, %v440
  %442 = vmatmul.f32.gmra.mxu0 %v370
  %v443 = vpop.f32.mrf.mxu0
  %v444 = vadd.f32 %v394, %v443
  %445 = vmatmul.f32.gmra.mxu0 %v371
  %v446 = vpop.f32.mrf.mxu0
  %v447 = vadd.f32 %v394, %v446
  %448 = vmatmul.f32.gmra.mxu0 %v372
  %v449 = vpop.f32.mrf.mxu0
  %v450 = vadd.f32 %v394, %v449
  %451 = vmatmul.f32.gmra.mxu0 %v373
  %v452 = vpop.f32.mrf.mxu0
  %v453 = vadd.f32 %v394, %v452
  %454 = vmatmul.f32.gmra.mxu0 %v374
  %v455 = vpop.f32.mrf.mxu0
  %v456 = vadd.f32 %v394, %v455
  %457 = vmatmul.f32.gmra.mxu0 %v375
  %v458 = vpop.f32.mrf.mxu0
  %v459 = vadd.f32 %v394, %v458
  %460 = vdwg.mxu0
  %vm461 = vcmask 15360
  %462 = vst.msk [vmem:[%s9] sm:$0xff] %vm461, %v414
  %463 = vst.msk [vmem:[%s9 + $0x8] sm:$0xff] %vm461, %v417
  %464 = vst.msk [vmem:[%s9 + $0x10] sm:$0xff] %vm461, %v420
  %465 = vst.msk [vmem:[%s9 + $0x18] sm:$0xff] %vm461, %v423
  %466 = vst.msk [vmem:[%s9 + $0x20] sm:$0xff] %vm461, %v426
  %467 = vst.msk [vmem:[%s9 + $0x28] sm:$0xff] %vm461, %v429
  %468 = vst.msk [vmem:[%s9 + $0x30] sm:$0xff] %vm461, %v432
  %469 = vst.msk [vmem:[%s9 + $0x38] sm:$0xff] %vm461, %v435
  %470 = vst.msk [vmem:[%s9 + $0x40] sm:$0xff] %vm461, %v438
  %471 = vst.msk [vmem:[%s9 + $0x48] sm:$0xff] %vm461, %v441
  %472 = vst.msk [vmem:[%s9 + $0x50] sm:$0xff] %vm461, %v444
  %473 = vst.msk [vmem:[%s9 + $0x58] sm:$0xff] %vm461, %v447
  %474 = vst.msk [vmem:[%s9 + $0x60] sm:$0xff] %vm461, %v450
  %475 = vst.msk [vmem:[%s9 + $0x68] sm:$0xff] %vm461, %v453
  %476 = vst.msk [vmem:[%s9 + $0x70] sm:$0xff] %vm461, %v456
  %477 = vst.msk [vmem:[%s9 + $0x78] sm:$0xff] %vm461, %v459
  %v478 = vpack.c.bf16 %v361, %v360
  %v479 = vpack.c.bf16 %v363, %v362
  %v480 = vpack.c.bf16 %v365, %v364
  %v481 = vpack.c.bf16 %v367, %v366
  %v482 = vpack.c.bf16 %v369, %v368
  %v483 = vpack.c.bf16 %v371, %v370
  %v484 = vpack.c.bf16 %v373, %v372
  %v485 = vpack.c.bf16 %v375, %v374
  %v486 = vld [vmem:[%s5] sm:$0xf]
  %v487 = vld [vmem:[%s5 + $0x4] sm:$0xf]
  %v488 = vld [vmem:[%s5 + $0x8] sm:$0xf]
  %v489 = vld [vmem:[%s5 + $0xc] sm:$0xf]
  %v490 = vld [vmem:[%s5 + $0x10] sm:$0xf]
  %v491 = vld [vmem:[%s5 + $0x14] sm:$0xf]
  %v492 = vld [vmem:[%s5 + $0x18] sm:$0xf]
  %v493 = vld [vmem:[%s5 + $0x1c] sm:$0xf]
  %v494 = vld [vmem:[%s5 + $0x20] sm:$0xf]
  %v495 = vld [vmem:[%s5 + $0x24] sm:$0xf]
  %v496 = vld [vmem:[%s5 + $0x28] sm:$0xf]
  %v497 = vld [vmem:[%s5 + $0x2c] sm:$0xf]
  %v498 = vld [vmem:[%s5 + $0x30] sm:$0xf]
  %v499 = vld [vmem:[%s5 + $0x34] sm:$0xf]
  %v500 = vld [vmem:[%s5 + $0x38] sm:$0xf]
  %v501 = vld [vmem:[%s5 + $0x3c] sm:$0xf]
  %v502 = vld [vmem:[%s6] sm:$0x1]
  %v504 = vperm.slane %v502, 0
  %v522 = vunpack.c.l.b16 %v486
  %v523 = vunpack.c.l.b16 %v487
  %v524 = vunpack.c.l.b16 %v488
  %v525 = vunpack.c.l.b16 %v489
  %v526 = vunpack.c.l.b16 %v490
  %v527 = vunpack.c.l.b16 %v491
  %v528 = vunpack.c.l.b16 %v492
  %v529 = vunpack.c.l.b16 %v493
  %v530 = vunpack.c.l.b16 %v494
  %v531 = vunpack.c.l.b16 %v495
  %v532 = vunpack.c.l.b16 %v496
  %v533 = vunpack.c.l.b16 %v497
  %v534 = vunpack.c.l.b16 %v498
  %v535 = vunpack.c.l.b16 %v499
  %v536 = vunpack.c.l.b16 %v500
  %v537 = vunpack.c.l.b16 %v501
  %v538 = vpack.c.b16 %v523, %v522
  %v539 = vpack.c.b16 %v525, %v524
  %v540 = vpack.c.b16 %v527, %v526
  %v541 = vpack.c.b16 %v529, %v528
  %v542 = vpack.c.b16 %v531, %v530
  %v543 = vpack.c.b16 %v533, %v532
  %v544 = vpack.c.b16 %v535, %v534
  %v545 = vpack.c.b16 %v537, %v536
  %554 = vmatpush.bf16.msra.mxu0 %v545
  %555 = vmatpush.bf16.msra.mxu0 %v544
  %556 = vmatpush.bf16.msra.mxu0 %v543
  %557 = vmatpush.bf16.msra.mxu0 %v542
  %558 = vmatpush.bf16.msra.mxu0 %v541
  %559 = vmatpush.bf16.msra.mxu0 %v540
  %560 = vmatpush.bf16.msra.mxu0 %v539
  %561 = vmatpush.bf16.msra.mxu0 %v538
  %562 = vmatmul.bf16.gmra.mxu0 %v478
  %v563 = vpop.f32.mrf.mxu0
  %v564 = vadd.f32 %v504, %v563
  %v565 = vpop.f32.mrf.mxu0
  %v566 = vadd.f32 %v504, %v565
  %567 = vmatmul.bf16.gmra.mxu0 %v479
  %v568 = vpop.f32.mrf.mxu0
  %v569 = vadd.f32 %v504, %v568
  %v570 = vpop.f32.mrf.mxu0
  %v571 = vadd.f32 %v504, %v570
  %572 = vmatmul.bf16.gmra.mxu0 %v480
  %v573 = vpop.f32.mrf.mxu0
  %v574 = vadd.f32 %v504, %v573
  %v575 = vpop.f32.mrf.mxu0
  %v576 = vadd.f32 %v504, %v575
  %577 = vmatmul.bf16.gmra.mxu0 %v481
  %v578 = vpop.f32.mrf.mxu0
  %v579 = vadd.f32 %v504, %v578
  %v580 = vpop.f32.mrf.mxu0
  %v581 = vadd.f32 %v504, %v580
  %582 = vmatmul.bf16.gmra.mxu0 %v482
  %v583 = vpop.f32.mrf.mxu0
  %v584 = vadd.f32 %v504, %v583
  %v585 = vpop.f32.mrf.mxu0
  %v586 = vadd.f32 %v504, %v585
  %587 = vmatmul.bf16.gmra.mxu0 %v483
  %v588 = vpop.f32.mrf.mxu0
  %v589 = vadd.f32 %v504, %v588
  %v590 = vpop.f32.mrf.mxu0
  %v591 = vadd.f32 %v504, %v590
  %592 = vmatmul.bf16.gmra.mxu0 %v484
  %v593 = vpop.f32.mrf.mxu0
  %v594 = vadd.f32 %v504, %v593
  %v595 = vpop.f32.mrf.mxu0
  %v596 = vadd.f32 %v504, %v595
  %597 = vmatmul.bf16.gmra.mxu0 %v485
  %v598 = vpop.f32.mrf.mxu0
  %v599 = vadd.f32 %v504, %v598
  %v600 = vpop.f32.mrf.mxu0
  %v601 = vadd.f32 %v504, %v600
  %602 = vdwg.mxu0
  %v603 = vmax.f32 %v564, 0.0
  %v604 = vmax.f32 %v566, 0.0
  %v605 = vmax.f32 %v569, 0.0
  %v606 = vmax.f32 %v571, 0.0
  %v607 = vmax.f32 %v574, 0.0
  %v608 = vmax.f32 %v576, 0.0
  %v609 = vmax.f32 %v579, 0.0
  %v610 = vmax.f32 %v581, 0.0
  %v611 = vmax.f32 %v584, 0.0
  %v612 = vmax.f32 %v586, 0.0
  %v613 = vmax.f32 %v589, 0.0
  %v614 = vmax.f32 %v591, 0.0
  %v615 = vmax.f32 %v594, 0.0
  %v616 = vmax.f32 %v596, 0.0
  %v617 = vmax.f32 %v599, 0.0
  %v618 = vmax.f32 %v601, 0.0
  %v619 = vpack.c.bf16 %v604, %v603
  %v620 = vpack.c.bf16 %v606, %v605
  %v621 = vpack.c.bf16 %v608, %v607
  %v622 = vpack.c.bf16 %v610, %v609
  %v623 = vpack.c.bf16 %v612, %v611
  %v624 = vpack.c.bf16 %v614, %v613
  %v625 = vpack.c.bf16 %v616, %v615
  %v626 = vpack.c.bf16 %v618, %v617
  %v627 = vld [vmem:[%s7] sm:$0xff]
  %v628 = vld [vmem:[%s7 + $0x8] sm:$0xff]
  %v629 = vld [vmem:[%s7 + $0x10] sm:$0xff]
  %v630 = vld [vmem:[%s7 + $0x18] sm:$0xff]
  %v631 = vld [vmem:[%s7 + $0x20] sm:$0xff]
  %v632 = vld [vmem:[%s7 + $0x28] sm:$0xff]
  %v633 = vld [vmem:[%s7 + $0x30] sm:$0xff]
  %v634 = vld [vmem:[%s7 + $0x38] sm:$0xff]
  %v635 = vld [vmem:[%s7 + $0x40] sm:$0xff]
  %v636 = vld [vmem:[%s7 + $0x48] sm:$0xff]
  %v637 = vld [vmem:[%s7 + $0x50] sm:$0xff]
  %v638 = vld [vmem:[%s7 + $0x58] sm:$0xff]
  %v639 = vld [vmem:[%s7 + $0x60] sm:$0xff]
  %v640 = vld [vmem:[%s7 + $0x68] sm:$0xff]
  %v641 = vld [vmem:[%s7 + $0x70] sm:$0xff]
  %v642 = vld [vmem:[%s7 + $0x78] sm:$0xff]
  %v643 = vld [vmem:[%s8] sm:$0x3]
  %v645 = vperm.slane %v643, 0
  %v646 = vperm.slane %v643, 1
  %v665 = vunpack.c.l.b16 %v627
  %v666 = vunpack.c.h.b16 %v627
  %v667 = vunpack.c.l.b16 %v628
  %v668 = vunpack.c.h.b16 %v628
  %v669 = vunpack.c.l.b16 %v629
  %v670 = vunpack.c.h.b16 %v629
  %v671 = vunpack.c.l.b16 %v630
  %v672 = vunpack.c.h.b16 %v630
  %v673 = vunpack.c.l.b16 %v631
  %v674 = vunpack.c.h.b16 %v631
  %v675 = vunpack.c.l.b16 %v632
  %v676 = vunpack.c.h.b16 %v632
  %v677 = vunpack.c.l.b16 %v633
  %v678 = vunpack.c.h.b16 %v633
  %v679 = vunpack.c.l.b16 %v634
  %v680 = vunpack.c.h.b16 %v634
  %v681 = vunpack.c.l.b16 %v635
  %v682 = vunpack.c.h.b16 %v635
  %v683 = vunpack.c.l.b16 %v636
  %v684 = vunpack.c.h.b16 %v636
  %v685 = vunpack.c.l.b16 %v637
  %v686 = vunpack.c.h.b16 %v637
  %v687 = vunpack.c.l.b16 %v638
  %v688 = vunpack.c.h.b16 %v638
  %v689 = vunpack.c.l.b16 %v639
  %v690 = vunpack.c.h.b16 %v639
  %v691 = vunpack.c.l.b16 %v640
  %v692 = vunpack.c.h.b16 %v640
  %v693 = vunpack.c.l.b16 %v641
  %v694 = vunpack.c.h.b16 %v641
  %v695 = vunpack.c.l.b16 %v642
  %v696 = vunpack.c.h.b16 %v642
  %v697 = vpack.c.b16 %v667, %v665
  %v698 = vpack.c.b16 %v668, %v666
  %v699 = vpack.c.b16 %v671, %v669
  %v700 = vpack.c.b16 %v672, %v670
  %v701 = vpack.c.b16 %v675, %v673
  %v702 = vpack.c.b16 %v676, %v674
  %v703 = vpack.c.b16 %v679, %v677
  %v704 = vpack.c.b16 %v680, %v678
  %v705 = vpack.c.b16 %v683, %v681
  %v706 = vpack.c.b16 %v684, %v682
  %v707 = vpack.c.b16 %v687, %v685
  %v708 = vpack.c.b16 %v688, %v686
  %v709 = vpack.c.b16 %v691, %v689
  %v710 = vpack.c.b16 %v692, %v690
  %v711 = vpack.c.b16 %v695, %v693
  %v712 = vpack.c.b16 %v696, %v694
  %729 = vmatpush.bf16.msra.mxu0 %v711
  %730 = vmatpush.bf16.msra.mxu0 %v709
  %731 = vmatpush.bf16.msra.mxu0 %v707
  %732 = vmatpush.bf16.msra.mxu0 %v705
  %733 = vmatpush.bf16.msra.mxu0 %v703
  %734 = vmatpush.bf16.msra.mxu0 %v701
  %735 = vmatpush.bf16.msra.mxu0 %v699
  %736 = vmatpush.bf16.msra.mxu0 %v697
  %737 = vmatmul.bf16.gmra.mxu0 %v619
  %v738 = vpop.f32.mrf.mxu0
  %v739 = vadd.f32 %v645, %v738
  %v740 = vpop.f32.mrf.mxu0
  %v741 = vadd.f32 %v645, %v740
  %742 = vmatmul.bf16.gmra.mxu0 %v620
  %v743 = vpop.f32.mrf.mxu0
  %v744 = vadd.f32 %v645, %v743
  %v745 = vpop.f32.mrf.mxu0
  %v746 = vadd.f32 %v645, %v745
  %747 = vmatmul.bf16.gmra.mxu0 %v621
  %v748 = vpop.f32.mrf.mxu0
  %v749 = vadd.f32 %v645, %v748
  %v750 = vpop.f32.mrf.mxu0
  %v751 = vadd.f32 %v645, %v750
  %752 = vmatmul.bf16.gmra.mxu0 %v622
  %v753 = vpop.f32.mrf.mxu0
  %v754 = vadd.f32 %v645, %v753
  %v755 = vpop.f32.mrf.mxu0
  %v756 = vadd.f32 %v645, %v755
  %757 = vmatmul.bf16.gmra.mxu0 %v623
  %v758 = vpop.f32.mrf.mxu0
  %v759 = vadd.f32 %v645, %v758
  %v760 = vpop.f32.mrf.mxu0
  %v761 = vadd.f32 %v645, %v760
  %762 = vmatmul.bf16.gmra.mxu0 %v624
  %v763 = vpop.f32.mrf.mxu0
  %v764 = vadd.f32 %v645, %v763
  %v765 = vpop.f32.mrf.mxu0
  %v766 = vadd.f32 %v645, %v765
  %767 = vmatmul.bf16.gmra.mxu0 %v625
  %v768 = vpop.f32.mrf.mxu0
  %v769 = vadd.f32 %v645, %v768
  %v770 = vpop.f32.mrf.mxu0
  %v771 = vadd.f32 %v645, %v770
  %772 = vmatmul.bf16.gmra.mxu0 %v626
  %v773 = vpop.f32.mrf.mxu0
  %v774 = vadd.f32 %v645, %v773
  %v775 = vpop.f32.mrf.mxu0
  %v776 = vadd.f32 %v645, %v775
  %777 = vdwg.mxu0
  %778 = vmatpush.bf16.msra.mxu0 %v712
  %779 = vmatpush.bf16.msra.mxu0 %v710
  %780 = vmatpush.bf16.msra.mxu0 %v708
  %781 = vmatpush.bf16.msra.mxu0 %v706
  %782 = vmatpush.bf16.msra.mxu0 %v704
  %783 = vmatpush.bf16.msra.mxu0 %v702
  %784 = vmatpush.bf16.msra.mxu0 %v700
  %785 = vmatpush.bf16.msra.mxu0 %v698
  %786 = vmatmul.bf16.gmra.mxu0 %v619
  %v787 = vpop.f32.mrf.mxu0
  %v788 = vadd.f32 %v646, %v787
  %v789 = vpop.f32.mrf.mxu0
  %v790 = vadd.f32 %v646, %v789
  %791 = vmatmul.bf16.gmra.mxu0 %v620
  %v792 = vpop.f32.mrf.mxu0
  %v793 = vadd.f32 %v646, %v792
  %v794 = vpop.f32.mrf.mxu0
  %v795 = vadd.f32 %v646, %v794
  %796 = vmatmul.bf16.gmra.mxu0 %v621
  %v797 = vpop.f32.mrf.mxu0
  %v798 = vadd.f32 %v646, %v797
  %v799 = vpop.f32.mrf.mxu0
  %v800 = vadd.f32 %v646, %v799
  %801 = vmatmul.bf16.gmra.mxu0 %v622
  %v802 = vpop.f32.mrf.mxu0
  %v803 = vadd.f32 %v646, %v802
  %v804 = vpop.f32.mrf.mxu0
  %v805 = vadd.f32 %v646, %v804
  %806 = vmatmul.bf16.gmra.mxu0 %v623
  %v807 = vpop.f32.mrf.mxu0
  %v808 = vadd.f32 %v646, %v807
  %v809 = vpop.f32.mrf.mxu0
  %v810 = vadd.f32 %v646, %v809
  %811 = vmatmul.bf16.gmra.mxu0 %v624
  %v812 = vpop.f32.mrf.mxu0
  %v813 = vadd.f32 %v646, %v812
  %v814 = vpop.f32.mrf.mxu0
  %v815 = vadd.f32 %v646, %v814
  %816 = vmatmul.bf16.gmra.mxu0 %v625
  %v817 = vpop.f32.mrf.mxu0
  %v818 = vadd.f32 %v646, %v817
  %v819 = vpop.f32.mrf.mxu0
  %v820 = vadd.f32 %v646, %v819
  %821 = vmatmul.bf16.gmra.mxu0 %v626
  %v822 = vpop.f32.mrf.mxu0
  %v823 = vadd.f32 %v646, %v822
  %v824 = vpop.f32.mrf.mxu0
  %v825 = vadd.f32 %v646, %v824
  %826 = vdwg.mxu0
  %v827 = vtanh.pop %v739
  %v828 = vtanh.pop %v788
  %v829 = vtanh.pop %v741
  %v830 = vtanh.pop %v790
  %v831 = vtanh.pop %v744
  %v832 = vtanh.pop %v793
  %v833 = vtanh.pop %v746
  %v834 = vtanh.pop %v795
  %v835 = vtanh.pop %v749
  %v836 = vtanh.pop %v798
  %v837 = vtanh.pop %v751
  %v838 = vtanh.pop %v800
  %v839 = vtanh.pop %v754
  %v840 = vtanh.pop %v803
  %v841 = vtanh.pop %v756
  %v842 = vtanh.pop %v805
  %v843 = vtanh.pop %v759
  %v844 = vtanh.pop %v808
  %v845 = vtanh.pop %v761
  %v846 = vtanh.pop %v810
  %v847 = vtanh.pop %v764
  %v848 = vtanh.pop %v813
  %v849 = vtanh.pop %v766
  %v850 = vtanh.pop %v815
  %v851 = vtanh.pop %v769
  %v852 = vtanh.pop %v818
  %v853 = vtanh.pop %v771
  %v854 = vtanh.pop %v820
  %v855 = vtanh.pop %v774
  %v856 = vtanh.pop %v823
  %v857 = vtanh.pop %v776
  %v858 = vtanh.pop %v825
  %859 = vst [vmem:[%s10] sm:$0xff] %v827
  %860 = vst [vmem:[%s10 + $0x8] sm:$0xff] %v828
  %861 = vst [vmem:[%s10 + $0x10] sm:$0xff] %v829
  %862 = vst [vmem:[%s10 + $0x18] sm:$0xff] %v830
  %863 = vst [vmem:[%s10 + $0x20] sm:$0xff] %v831
  %864 = vst [vmem:[%s10 + $0x28] sm:$0xff] %v832
  %865 = vst [vmem:[%s10 + $0x30] sm:$0xff] %v833
  %866 = vst [vmem:[%s10 + $0x38] sm:$0xff] %v834
  %867 = vst [vmem:[%s10 + $0x40] sm:$0xff] %v835
  %868 = vst [vmem:[%s10 + $0x48] sm:$0xff] %v836
  %869 = vst [vmem:[%s10 + $0x50] sm:$0xff] %v837
  %870 = vst [vmem:[%s10 + $0x58] sm:$0xff] %v838
  %871 = vst [vmem:[%s10 + $0x60] sm:$0xff] %v839
  %872 = vst [vmem:[%s10 + $0x68] sm:$0xff] %v840
  %873 = vst [vmem:[%s10 + $0x70] sm:$0xff] %v841
  %874 = vst [vmem:[%s10 + $0x78] sm:$0xff] %v842
  %875 = vst [vmem:[%s10 + $0x80] sm:$0xff] %v843
  %876 = vst [vmem:[%s10 + $0x88] sm:$0xff] %v844
  %877 = vst [vmem:[%s10 + $0x90] sm:$0xff] %v845
  %878 = vst [vmem:[%s10 + $0x98] sm:$0xff] %v846
  %879 = vst [vmem:[%s10 + $0xa0] sm:$0xff] %v847
  %880 = vst [vmem:[%s10 + $0xa8] sm:$0xff] %v848
  %881 = vst [vmem:[%s10 + $0xb0] sm:$0xff] %v849
  %882 = vst [vmem:[%s10 + $0xb8] sm:$0xff] %v850
  %883 = vst [vmem:[%s10 + $0xc0] sm:$0xff] %v851
  %884 = vst [vmem:[%s10 + $0xc8] sm:$0xff] %v852
  %885 = vst [vmem:[%s10 + $0xd0] sm:$0xff] %v853
  %886 = vst [vmem:[%s10 + $0xd8] sm:$0xff] %v854
  %887 = vst [vmem:[%s10 + $0xe0] sm:$0xff] %v855
  %888 = vst [vmem:[%s10 + $0xe8] sm:$0xff] %v856
  %889 = vst [vmem:[%s10 + $0xf0] sm:$0xff] %v857
  %890 = vst [vmem:[%s10 + $0xf8] sm:$0xff] %v858
  // Predicated region
  $region38: #{_vae_forward_impl.1} parent=0 // pred_check
    _
  $region39: #{_vae_forward_impl.1} parent=0 // pred_check_branch
    %892 = sbr.rel (0) target = $region41
  $region40: #{_vae_forward_impl.1} parent=0 // pred_region
    _
  $region41: #{_vae_forward_impl.1} parent=0 // pred_fallthru
    _
  // Predicated region
  $region42: #{_vae_forward_impl.1} parent=0 // pred_check
    _
  $region43: #{_vae_forward_impl.1} parent=0 // pred_check_branch
    %894 = sbr.rel (0) target = $region45
  $region44: #{_vae_forward_impl.1} parent=0 // pred_region
    _
  $region45: #{_vae_forward_impl.1} parent=0 // pred_fallthru
    _
  // Predicated region
  $region46: #{_vae_forward_impl.1} parent=0 // pred_check
    _
  $region47: #{_vae_forward_impl.1} parent=0 // pred_check_branch
    %896 = sbr.rel (0) target = $region49
  $region48: #{_vae_forward_impl.1} parent=0 // pred_region
    _
  $region49: #{_vae_forward_impl.1} parent=0 // pred_fallthru
    _
  // Predicated region
  $region50: #{_vae_forward_impl.1} parent=0 // pred_check
    _
  $region51: #{_vae_forward_impl.1} parent=0 // pred_check_branch
    %898 = sbr.rel (0) target = $region53
  $region52: #{_vae_forward_impl.1} parent=0 // pred_region
    _
  $region53: #{_vae_forward_impl.1} parent=0 // pred_fallthru
    _

</llo_original>
